<compile_context>
chip_gen: v6e
topology: v6e:2x2x1
jax: 0.10.0
libtpu: 0.0.40
codegen_flags: <defaults>
</compile_context>

<pallas_src>
import functools
import math

import jax
import jax.numpy as jnp
from jax.experimental import pallas as pl
from jax.experimental.pallas import tpu as pltpu

# ------------------------------ configuration -------------------------------
D_MODEL = 32
EMBD_SCALE = 1
MLP_SCALE = 4.0
DIM = D_MODEL * EMBD_SCALE            # 32  (SwiGLU input/output width)
H_DIM = int(MLP_SCALE * D_MODEL)      # 128 (SwiGLU hidden width)
BIAS = True                           # configs.bias
USE_SQ_RELU = False                   # configs.use_sq_relu
BATCH, SEQLEN = 2, 8

BLOCK_ROWS = 512                      # row tile; far under VMEM on v5e/v6e/v7x
MATMUL_DTYPE = jnp.bfloat16           # MXU-native; f32 accumulate inside kernel


# ------------------------------ Pallas kernel --------------------------------
def _swiglu_kernel(x_ref, w13_ref, b13_ref, w2_ref, b2_ref, o_ref, *,
                   h_dim, use_sq_relu):
    """Fused SwiGLU: [w1 | v] matmul -> gate -> elementwise mul -> w2 matmul."""
    # Activations may arrive f32; one cast of the (tm, dim) tile is cheap.
    x = x_ref[...].astype(MATMUL_DTYPE)

    # (tm, dim) @ (dim, 2*h_dim) -> (tm, 2*h_dim); bf16 MXU feeds, f32 accumulate.
    h = jnp.dot(x, w13_ref[...], preferred_element_type=jnp.float32) + b13_ref[...]

    u = h[:, :h_dim]          # gate branch  (w1 x + b1)
    v = h[:, h_dim:]          # value branch (v  x + bv)
    # Elementwise gate kept in f32 (v5e has no bf16 VPU/EUP; f32 is safe everywhere).
    if use_sq_relu:
        g = jnp.square(jnp.maximum(u, 0.0))
    else:
        g = u * jax.nn.sigmoid(u)      # SiLU

    a = (g * v).astype(MATMUL_DTYPE)
    out = jnp.dot(a, w2_ref[...], preferred_element_type=jnp.float32) + b2_ref[...]
    o_ref[...] = out.astype(o_ref.dtype)


def _pick_row_tile(m):
    """Row tile size: cdiv tiling at scale, >=2 grid steps when possible (v7x megacore)."""
    if m > BLOCK_ROWS:
        return BLOCK_ROWS
    if m >= 16 and m % 16 == 0:
        return m // 2                 # two sublane-aligned steps -> both TCs busy
    return m


def swiglu_mlp(x, fused):
    """x: (..., DIM) -> (..., DIM); single fused pallas_call using pre-fused params."""
    *lead, dim = x.shape
    x2 = x.reshape(-1, dim)
    m = x2.shape[0]
    h_dim = fused["w2"].shape[0]

    tm = _pick_row_tile(m)
    grid = (pl.cdiv(m, tm),)

    out = pl.pallas_call(
        functools.partial(_swiglu_kernel, h_dim=h_dim, use_sq_relu=USE_SQ_RELU),
        grid=grid,
        in_specs=[
            pl.BlockSpec((tm, dim), lambda i: (i, 0)),
            pl.BlockSpec((dim, 2 * h_dim), lambda i: (0, 0)),
            pl.BlockSpec((1, 2 * h_dim), lambda i: (0, 0)),
            pl.BlockSpec((h_dim, dim), lambda i: (0, 0)),
            pl.BlockSpec((1, dim), lambda i: (0, 0)),
        ],
        out_specs=pl.BlockSpec((tm, dim), lambda i: (i, 0)),
        out_shape=jax.ShapeDtypeStruct((m, dim), jnp.float32),
        compiler_params=pltpu.CompilerParams(dimension_semantics=("parallel",)),
    )(x2, fused["w13"], fused["b13"], fused["w2"], fused["b2"])
    return out.reshape(*lead, dim)


# ------------------------------ parameter init -------------------------------
def init_params(key):
    ks = jax.random.split(key, 6)

    def lin_w(k, fan_in, fan_out):
        bound = 1.0 / math.sqrt(fan_in)
        return jax.random.uniform(k, (fan_in, fan_out), jnp.float32, -bound, bound)

    def lin_b(k, fan_in, fan_out):
        if not BIAS:
            return jnp.zeros((1, fan_out), jnp.float32)
        bound = 1.0 / math.sqrt(fan_in)
        return jax.random.uniform(k, (1, fan_out), jnp.float32, -bound, bound)

    return dict(
        w1=lin_w(ks[0], DIM, H_DIM), b1=lin_b(ks[1], DIM, H_DIM),
        w3=lin_w(ks[2], DIM, H_DIM), b3=lin_b(ks[3], DIM, H_DIM),   # the "v" projection
        w2=lin_w(ks[4], H_DIM, DIM), b2=lin_b(ks[5], H_DIM, DIM),
    )


def prepare_params(params):
    """One-time fuse + cast (hoisted out of the forward): lane-dense bf16 [w1|w3]."""
    return dict(
        w13=jnp.concatenate([params["w1"], params["w3"]], axis=1).astype(MATMUL_DTYPE),
        b13=jnp.concatenate([params["b1"], params["b3"]], axis=1).astype(jnp.float32),
        w2=params["w2"].astype(MATMUL_DTYPE),
        b2=params["b2"].astype(jnp.float32),
    )


# ----------------------------------- main -------------------------------------
if __name__ == "__main__":
    key = jax.random.PRNGKey(0)
    pkey, xkey = jax.random.split(key)
    params = init_params(pkey)
    fused = prepare_params(params)
    x = jax.random.normal(xkey, (BATCH, SEQLEN, DIM), jnp.float32)

    fwd = jax.jit(swiglu_mlp)
    out = fwd(x, fused)
    jax.block_until_ready(out)
    assert out.shape == (BATCH, SEQLEN, DIM)
    assert bool(jnp.all(jnp.isfinite(out)))

    # plain-JAX reference mirroring the kernel's bf16-input / f32-accumulate numerics
    def ref(xr, fp):
        h_dim = fp["w2"].shape[0]
        xb = xr.astype(MATMUL_DTYPE).astype(jnp.float32)
        h = xb @ fp["w13"].astype(jnp.float32) + fp["b13"]
        u, v = h[:, :h_dim], h[:, h_dim:]
        g = jnp.square(jnp.maximum(u, 0.0)) if USE_SQ_RELU else u * jax.nn.sigmoid(u)
        a = (g * v).astype(MATMUL_DTYPE).astype(jnp.float32)
        return a @ fp["w2"].astype(jnp.float32) + fp["b2"]

    r = ref(x.reshape(-1, DIM), fused).reshape(BATCH, SEQLEN, DIM)
    assert jnp.allclose(out, r, atol=1e-2, rtol=1e-2)
    print("KERNEL_OK")
</pallas_src>

<mosaic_0001>
module attributes {stable_mosaic.version = 11 : i64} {
  func.func @_swiglu_kernel(%arg0: i32, %arg1: memref<8x32xf32, #tpu.memory_space<vmem>>, %arg2: memref<32x256xbf16, #tpu.memory_space<vmem>>, %arg3: memref<1x256xf32, #tpu.memory_space<vmem>>, %arg4: memref<128x32xbf16, #tpu.memory_space<vmem>>, %arg5: memref<1x32xf32, #tpu.memory_space<vmem>>, %arg6: memref<8x32xf32, #tpu.memory_space<vmem>>) attributes {dimension_semantics = [#tpu.dimension_semantics<parallel>], iteration_bounds = array<i64: 2>, scalar_prefetch = 0 : i64, scratch_operands = 0 : i64, tpu.core_type = #tpu.core_type<tc>, window_params = [{transform_indices = @transform_0, window_bounds = array<i64: 8, 32>}, {pipeline_mode = #tpu.pipeline_mode<synchronous>, transform_indices = @transform_1, window_bounds = array<i64: 32, 256>}, {pipeline_mode = #tpu.pipeline_mode<synchronous>, transform_indices = @transform_2, window_bounds = array<i64: 1, 256>}, {pipeline_mode = #tpu.pipeline_mode<synchronous>, transform_indices = @transform_3, window_bounds = array<i64: 128, 32>}, {pipeline_mode = #tpu.pipeline_mode<synchronous>, transform_indices = @transform_4, window_bounds = array<i64: 1, 32>}, {transform_indices = @transform_5, window_bounds = array<i64: 8, 32>}]} {
    %c0 = arith.constant 0 : index
    %c0_0 = arith.constant 0 : index
    %0 = vector.load %arg1[%c0, %c0_0] : memref<8x32xf32, #tpu.memory_space<vmem>>, vector<8x32xf32>
    %1 = arith.truncf %0 : vector<8x32xf32> to vector<8x32xbf16>
    %c0_1 = arith.constant 0 : index
    %c0_2 = arith.constant 0 : index
    %2 = vector.load %arg2[%c0_1, %c0_2] : memref<32x256xbf16, #tpu.memory_space<vmem>>, vector<32x256xbf16>
    %cst = arith.constant dense<0.000000e+00> : vector<8x256xf32>
    %3 = tpu.matmul %1, %2, %cst {dimension_numbers = #tpu.dot_dimension_numbers<[1], [0], [0], [1], [0, 0, 1, 1], [], []>} : vector<8x32xbf16>, vector<32x256xbf16>, vector<8x256xf32> -> vector<8x256xf32>
    %c0_3 = arith.constant 0 : index
    %c0_4 = arith.constant 0 : index
    %4 = vector.load %arg3[%c0_3, %c0_4] : memref<1x256xf32, #tpu.memory_space<vmem>>, vector<1x256xf32>
    %5 = vector.broadcast %4 : vector<1x256xf32> to vector<8x256xf32>
    %6 = arith.addf %3, %5 : vector<8x256xf32>
    %7 = vector.extract_strided_slice %6 {offsets = [0, 0], sizes = [8, 128], strides = [1, 1]} : vector<8x256xf32> to vector<8x128xf32>
    %8 = vector.extract_strided_slice %6 {offsets = [0, 128], sizes = [8, 128], strides = [1, 1]} : vector<8x256xf32> to vector<8x128xf32>
    %9 = arith.negf %7 : vector<8x128xf32>
    %10 = math.exp %9 : vector<8x128xf32>
    %cst_5 = arith.constant 1.000000e+00 : f32
    %11 = vector.broadcast %cst_5 : f32 to vector<8x128xf32>
    %12 = arith.addf %11, %10 : vector<8x128xf32>
    %13 = arith.divf %11, %12 : vector<8x128xf32>
    %14 = arith.mulf %7, %13 : vector<8x128xf32>
    %15 = arith.mulf %14, %8 : vector<8x128xf32>
    %16 = arith.truncf %15 : vector<8x128xf32> to vector<8x128xbf16>
    %c0_6 = arith.constant 0 : index
    %c0_7 = arith.constant 0 : index
    %17 = vector.load %arg4[%c0_6, %c0_7] : memref<128x32xbf16, #tpu.memory_space<vmem>>, vector<128x32xbf16>
    %cst_8 = arith.constant dense<0.000000e+00> : vector<8x32xf32>
    %18 = tpu.matmul %16, %17, %cst_8 {dimension_numbers = #tpu.dot_dimension_numbers<[1], [0], [0], [1], [0, 0, 1, 1], [], []>} : vector<8x128xbf16>, vector<128x32xbf16>, vector<8x32xf32> -> vector<8x32xf32>
    %c0_9 = arith.constant 0 : index
    %c0_10 = arith.constant 0 : index
    %19 = vector.load %arg5[%c0_9, %c0_10] : memref<1x32xf32, #tpu.memory_space<vmem>>, vector<1x32xf32>
    %20 = vector.broadcast %19 : vector<1x32xf32> to vector<8x32xf32>
    %21 = arith.addf %18, %20 : vector<8x32xf32>
    %c0_11 = arith.constant 0 : index
    %c0_12 = arith.constant 0 : index
    %22 = vector.load %arg6[%c0_11, %c0_12] : memref<8x32xf32, #tpu.memory_space<vmem>>, vector<8x32xf32>
    tpu.vector_store %arg6[%c0_11, %c0_12], %21 {strides = array<i32>} : memref<8x32xf32, #tpu.memory_space<vmem>>, vector<8x32xf32>,
    return
  }
  func.func @transform_0(%arg0: i32) -> (i32, i32) {
    %c0_i32 = arith.constant 0 : i32
    %c0_i32_0 = arith.constant 0 : i32
    return %arg0, %c0_i32 : i32, i32
  }
  func.func @transform_1(%arg0: i32) -> (i32, i32) {
    %c0_i32 = arith.constant 0 : i32
    %c0_i32_0 = arith.constant 0 : i32
    %c0_i32_1 = arith.constant 0 : i32
    return %c0_i32, %c0_i32_0 : i32, i32
  }
  func.func @transform_2(%arg0: i32) -> (i32, i32) {
    %c0_i32 = arith.constant 0 : i32
    %c0_i32_0 = arith.constant 0 : i32
    %c0_i32_1 = arith.constant 0 : i32
    return %c0_i32, %c0_i32_0 : i32, i32
  }
  func.func @transform_3(%arg0: i32) -> (i32, i32) {
    %c0_i32 = arith.constant 0 : i32
    %c0_i32_0 = arith.constant 0 : i32
    %c0_i32_1 = arith.constant 0 : i32
    return %c0_i32, %c0_i32_0 : i32, i32
  }
  func.func @transform_4(%arg0: i32) -> (i32, i32) {
    %c0_i32 = arith.constant 0 : i32
    %c0_i32_0 = arith.constant 0 : i32
    %c0_i32_1 = arith.constant 0 : i32
    return %c0_i32, %c0_i32_0 : i32, i32
  }
  func.func @transform_5(%arg0: i32) -> (i32, i32) {
    %c0_i32 = arith.constant 0 : i32
    %c0_i32_0 = arith.constant 0 : i32
    return %arg0, %c0_i32 : i32, i32
  }
}

</mosaic_0001>

<llo_original>
// kernel: swiglu_mlp.1
$region0: #{swiglu_mlp.1}
  #allocation0 [shape = 'u32[]', space=smem, size = 0x4, offset = 0x4, fixed_abs, tag = 'smem constant byte address 0x4 - core index']
  #allocation1 [shape = 'u32[144,128]{1,0:T(1,128)}', space=vmem, size = 0x12000, scoped, tag = 'internal scratch']
  %s0 = inlined_call_operand.vmem [shape: f32[16,32], index: 0, kind: input, shape index: {}]
  %s1 = inlined_call_operand.vmem [shape: bf16[32,256], index: 1, kind: input, shape index: {}]
  %s2 = inlined_call_operand.vmem [shape: f32[1,256], index: 2, kind: input, shape index: {}]
  %s3 = inlined_call_operand.vmem [shape: bf16[128,32], index: 3, kind: input, shape index: {}]
  %s4 = inlined_call_operand.vmem [shape: f32[1,32], index: 4, kind: input, shape index: {}]
  %s5 = inlined_call_operand.hbm [shape: f32[16,32], index: 5, kind: output, shape index: {}]
  %s6 = sld [smem:[#allocation0]]
  $region53: #{swiglu_mlp.1} parent=0
    _
  %s8 = ssub.s32 1, %s6
  %s9 = scalar_select 0, %s8, %s6
  $region1: #{swiglu_mlp.1} parent=0
    #allocation2 [shape = 'u8[8192]{0}', space=vmem, size = 0x2000, scoped, tag = 'output window, operand 0']
    #allocation3 [shape = 's32[2]{0}', space=sflag, size = 0x8, scoped, tag = 'scoped memory for swiglu_mlp.1']
    %10 = vsyncpa [#allocation3], 0
    %s11 = scalar_lea.sflag [#allocation3], 1
    %12 = vsyncpa %s11, 0
    loop: start=0, step=1, limit=4
    $region2: #{swiglu_mlp.1} parent=1 // loop_pre_header
      _
    $region3: #{swiglu_mlp.1} parent=1 // loop_header
      %s14 = sphi 0, %s18
      %p15 = scmp.ge.s32.totalorder %s14, 4
      %s24 = sphi 0, %s26
      %s27 = sphi 0, %s24
      %s28 = sphi 0, %s27
      %s44 = sphi 0, %s28
      %s48 = sphi 0, %s48
      %s50 = sphi 0, %s48
      %s51 = sphi 0, %s50
      %s65 = sphi 0, %s51
      %s69 = sphi 0, %s69
      %s71 = sphi 0, %s69
      %s72 = sphi 0, %s71
      %s86 = sphi 0, %s72
      %s90 = sphi 0, %s90
      %s92 = sphi 0, %s90
      %s93 = sphi 0, %s92
      %s107 = sphi 0, %s93
      %s111 = sphi 0, %s111
      %s113 = sphi 0, %s111
      %s114 = sphi 0, %s113
      %s128 = sphi 0, %s114
      %s134 = sphi 0, %s136
      %s137 = sphi 0, %s134
      %s138 = sphi 0, %s137
      %s154 = sphi 0, %s138
    $region4: #{swiglu_mlp.1} parent=1 // loop_header_branch
      %17 = sbr.rel (%p15) target = $region8
    $region5: #{swiglu_mlp.1} parent=1 // loop_body
      %s19 = ssub.s32 %s14, 1
      %s20 = ssub.s32 %s14, 2
      %s21 = sadd.s32 %s14, 1
      %s22 = ssub.s32 %s14, %s21
      %p23 = scmp.eq.s32.totalorder %s22, 0
      %s25 = sadd.s32 %s24, 1
      %s26 = scalar_select %p23, %s24, %s25
      %p29 = pneg %p23
      %p30 = scmp.eq.s32.totalorder %s14, 1
      %p31 = por %p29, %p30
      %p32 = scmp.ne.s32.totalorder %s24, %s27
      %p33 = scmp.eq.s32.totalorder %s14, 0
      %p34 = por %p32, %p33
      %p35 = scmp.ne.s32.totalorder %s24, %s27
      %p36 = scmp.eq.s32.totalorder %s19, 1
      %p37 = por %p35, %p36
      %p38 = scmp.ne.s32.totalorder %s27, %s28
      %p39 = scmp.eq.s32.totalorder %s19, 0
      %p40 = por %p38, %p39
      %p41 = scmp.ne.s32.totalorder %s27, %s28
      %p42 = scmp.eq.s32.totalorder %s20, 1
      %p43 = por %p41, %p42
      %p45 = scmp.ne.s32.totalorder %s28, %s44
      %p46 = scmp.eq.s32.totalorder %s20, 0
      %p47 = por %p45, %p46
      %s49 = sadd.s32 %s48, 1
      %p52 = scmp.eq.s32.totalorder %s14, 1
      %p53 = scmp.ne.s32.totalorder %s48, %s50
      %p54 = scmp.eq.s32.totalorder %s14, 0
      %p55 = por %p53, %p54
      %p56 = scmp.ne.s32.totalorder %s48, %s50
      %p57 = scmp.eq.s32.totalorder %s19, 1
      %p58 = por %p56, %p57
      %p59 = scmp.ne.s32.totalorder %s50, %s51
      %p60 = scmp.eq.s32.totalorder %s19, 0
      %p61 = por %p59, %p60
      %p62 = scmp.ne.s32.totalorder %s50, %s51
      %p63 = scmp.eq.s32.totalorder %s20, 1
      %p64 = por %p62, %p63
      %p66 = scmp.ne.s32.totalorder %s51, %s65
      %p67 = scmp.eq.s32.totalorder %s20, 0
      %p68 = por %p66, %p67
      %s70 = sadd.s32 %s69, 1
      %p73 = scmp.eq.s32.totalorder %s14, 1
      %p74 = scmp.ne.s32.totalorder %s69, %s71
      %p75 = scmp.eq.s32.totalorder %s14, 0
      %p76 = por %p74, %p75
      %p77 = scmp.ne.s32.totalorder %s69, %s71
      %p78 = scmp.eq.s32.totalorder %s19, 1
      %p79 = por %p77, %p78
      %p80 = scmp.ne.s32.totalorder %s71, %s72
      %p81 = scmp.eq.s32.totalorder %s19, 0
      %p82 = por %p80, %p81
      %p83 = scmp.ne.s32.totalorder %s71, %s72
      %p84 = scmp.eq.s32.totalorder %s20, 1
      %p85 = por %p83, %p84
      %p87 = scmp.ne.s32.totalorder %s72, %s86
      %p88 = scmp.eq.s32.totalorder %s20, 0
      %p89 = por %p87, %p88
      %s91 = sadd.s32 %s90, 1
      %p94 = scmp.eq.s32.totalorder %s14, 1
      %p95 = scmp.ne.s32.totalorder %s90, %s92
      %p96 = scmp.eq.s32.totalorder %s14, 0
      %p97 = por %p95, %p96
      %p98 = scmp.ne.s32.totalorder %s90, %s92
      %p99 = scmp.eq.s32.totalorder %s19, 1
      %p100 = por %p98, %p99
      %p101 = scmp.ne.s32.totalorder %s92, %s93
      %p102 = scmp.eq.s32.totalorder %s19, 0
      %p103 = por %p101, %p102
      %p104 = scmp.ne.s32.totalorder %s92, %s93
      %p105 = scmp.eq.s32.totalorder %s20, 1
      %p106 = por %p104, %p105
      %p108 = scmp.ne.s32.totalorder %s93, %s107
      %p109 = scmp.eq.s32.totalorder %s20, 0
      %p110 = por %p108, %p109
      %s112 = sadd.s32 %s111, 1
      %p115 = scmp.eq.s32.totalorder %s14, 1
      %p116 = scmp.ne.s32.totalorder %s111, %s113
      %p117 = scmp.eq.s32.totalorder %s14, 0
      %p118 = por %p116, %p117
      %p119 = scmp.ne.s32.totalorder %s111, %s113
      %p120 = scmp.eq.s32.totalorder %s19, 1
      %p121 = por %p119, %p120
      %p122 = scmp.ne.s32.totalorder %s113, %s114
      %p123 = scmp.eq.s32.totalorder %s19, 0
      %p124 = por %p122, %p123
      %p125 = scmp.ne.s32.totalorder %s113, %s114
      %p126 = scmp.eq.s32.totalorder %s20, 1
      %p127 = por %p125, %p126
      %p129 = scmp.ne.s32.totalorder %s114, %s128
      %p130 = scmp.eq.s32.totalorder %s20, 0
      %p131 = por %p129, %p130
      %s132 = ssub.s32 %s14, %s21
      %p133 = scmp.eq.s32.totalorder %s132, 0
      %s135 = sadd.s32 %s134, 1
      %s136 = scalar_select %p133, %s134, %s135
      %p139 = pneg %p133
      %p140 = scmp.eq.s32.totalorder %s14, 1
      %p141 = por %p139, %p140
      %p142 = scmp.ne.s32.totalorder %s134, %s137
      %p143 = scmp.eq.s32.totalorder %s14, 0
      %p144 = por %p142, %p143
      %p145 = scmp.ne.s32.totalorder %s134, %s137
      %p146 = scmp.eq.s32.totalorder %s19, 1
      %p147 = por %p145, %p146
      %p148 = scmp.ne.s32.totalorder %s137, %s138
      %p149 = scmp.eq.s32.totalorder %s19, 0
      %p150 = por %p148, %p149
      %p151 = scmp.ne.s32.totalorder %s137, %s138
      %p152 = scmp.eq.s32.totalorder %s20, 1
      %p153 = por %p151, %p152
      %p155 = scmp.ne.s32.totalorder %s138, %s154
      %p156 = scmp.eq.s32.totalorder %s20, 0
      %p157 = por %p155, %p156
      %p158 = scmp.le.s32.totalorder 1, %s14
      %p159 = scmp.lt.s32.totalorder %s14, 3
      %p160 = pnand %p158, %p159
      %p161 = pneg %p160
      // Predicated region
      $region9: #{swiglu_mlp.1} parent=5 // pred_check
        _
      $region10: #{swiglu_mlp.1} parent=5 // pred_check_branch
        %163 = sbr.rel (%p160) target = $region12
      $region11: #{swiglu_mlp.1} parent=5 // pred_region
        %s164 = ssub.s32 %s14, 1
        // Predicated region
        $region13: #{swiglu_mlp.1} parent=11 // pred_check
          %p165 = pneg %p61
        $region14: #{swiglu_mlp.1} parent=11 // pred_check_branch
          %167 = sbr.rel (%p165) target = $region16
        $region15: #{swiglu_mlp.1} parent=11 // pred_region
          _
        $region16: #{swiglu_mlp.1} parent=11 // pred_fallthru
          _
        // Predicated region
        $region17: #{swiglu_mlp.1} parent=11 // pred_check
          %p168 = pneg %p82
        $region18: #{swiglu_mlp.1} parent=11 // pred_check_branch
          %170 = sbr.rel (%p168) target = $region20
        $region19: #{swiglu_mlp.1} parent=11 // pred_region
          _
        $region20: #{swiglu_mlp.1} parent=11 // pred_fallthru
          _
        // Predicated region
        $region21: #{swiglu_mlp.1} parent=11 // pred_check
          %p171 = pneg %p103
        $region22: #{swiglu_mlp.1} parent=11 // pred_check_branch
          %173 = sbr.rel (%p171) target = $region24
        $region23: #{swiglu_mlp.1} parent=11 // pred_region
          _
        $region24: #{swiglu_mlp.1} parent=11 // pred_fallthru
          _
        // Predicated region
        $region25: #{swiglu_mlp.1} parent=11 // pred_check
          %p174 = pneg %p124
        $region26: #{swiglu_mlp.1} parent=11 // pred_check_branch
          %176 = sbr.rel (%p174) target = $region28
        $region27: #{swiglu_mlp.1} parent=11 // pred_region
          _
        $region28: #{swiglu_mlp.1} parent=11 // pred_fallthru
          _
      $region12: #{swiglu_mlp.1} parent=5 // pred_fallthru
        _
      %p177 = scmp.lt.s32.totalorder %s14, 2
      // Predicated region
      $region29: #{swiglu_mlp.1} parent=5 // pred_check
        %p178 = pneg %p177
      $region30: #{swiglu_mlp.1} parent=5 // pred_check_branch
        %180 = sbr.rel (%p178) target = $region32
      $region31: #{swiglu_mlp.1} parent=5 // pred_region
        // Predicated region
        $region33: #{swiglu_mlp.1} parent=31 // pred_check
          %p181 = pneg %p34
        $region34: #{swiglu_mlp.1} parent=31 // pred_check_branch
          %183 = sbr.rel (%p181) target = $region36
        $region35: #{swiglu_mlp.1} parent=31 // pred_region
          %p184 = scmp.lt.s32.totalorder %s14, 1
          %s185 = scalar_select %p184, %s14, 1
          %s186 = smul.addr %s185, 8
          %s187 = scalar_lea.vmem %s0, %s186
        $region36: #{swiglu_mlp.1} parent=31 // pred_fallthru
          _
      $region32: #{swiglu_mlp.1} parent=5 // pred_fallthru
        _
      %p188 = scmp.le.s32.totalorder 1, %s14
      %p189 = scmp.lt.s32.totalorder %s14, 3
      %p190 = pnand %p188, %p189
      %p191 = pneg %p190
      // Predicated region
      $region37: #{swiglu_mlp.1} parent=5 // pred_check
        _
      $region38: #{swiglu_mlp.1} parent=5 // pred_check_branch
        %193 = sbr.rel (%p190) target = $region40
      $region39: #{swiglu_mlp.1} parent=5 // pred_region
        %s194 = ssub.s32 %s14, 1
        %p195 = scmp.lt.s32.totalorder %s19, 1
        %s196 = scalar_select %p195, %s19, 1
        %s197 = smul.addr %s196, 8
        %s198 = scalar_lea.vmem %s0, %s197
        %p199 = pneg %p40
        %p200 = pneg %p37
        %p201 = pneg %p61
        %p202 = pneg %p58
        %p203 = pneg %p82
        %p204 = pneg %p79
        %p205 = pneg %p103
        %p206 = pneg %p100
        %p207 = pneg %p124
        %p208 = pneg %p121
        %p209 = pneg %p150
        %p210 = pneg %p147
        %s211 = sand.u32 %s137, 1
        %s212 = scalar_lea.sflag [#allocation3], %s211
        %s213 = sand.u32 %s137, 1
        %s214 = smul.addr %s213, 8
        %s215 = scalar_lea.vmem [#allocation2], %s214
        %p216 = scmp.lt.s32.totalorder %s19, 1
        %s217 = scalar_select %p216, %s19, 1
        %s218 = smul.addr %s217, 8
        %s219 = scalar_lea.vmem %s0, %s218
        %v221 = vld [vmem:[%s219] sm:$0xff]
        %v222 = vpack.c.bf16 %v221, %v221
        %v223 = vld [vmem:[%s1] sm:$0xff]
        %v224 = vld [vmem:[%s1 + $0x8] sm:$0xff]
        %v225 = vld [vmem:[%s1 + $0x10] sm:$0xff]
        %v226 = vld [vmem:[%s1 + $0x18] sm:$0xff]
        %v227 = vld [vmem:[%s2] sm:$0x3]
        %v229 = vlaneseq
        %v230 = vshrl.u32 %v229, 7
        %v231 = vsub.s32 0, %v230
        %v232 = vrot.slane %v227, %v231
        %v233 = vlaneseq
        %v234 = vshrl.u32 %v233, 7
        %v235 = vsub.s32 1, %v234
        %v236 = vrot.slane %v227, %v235
        %v243 = vunpack.c.l.b16 %v223
        %v244 = vunpack.c.h.b16 %v223
        %v245 = vunpack.c.l.b16 %v224
        %v246 = vunpack.c.h.b16 %v224
        %v247 = vunpack.c.l.b16 %v225
        %v248 = vunpack.c.h.b16 %v225
        %v249 = vunpack.c.l.b16 %v226
        %v250 = vunpack.c.h.b16 %v226
        %v251 = vpack.c.b16 %v245, %v243
        %v252 = vpack.c.b16 %v246, %v244
        %v253 = vpack.c.b16 %v249, %v247
        %v254 = vpack.c.b16 %v250, %v248
        %vm259 = vcmask 261120
        %v261 = vsel %vm259, %v222, 0
        %263 = vmatprep.subr.bf16.mxu0 0
        %264 = vmatpush1.bf16.msra.mxu0 0
        %265 = vmatprep.subr.bf16.mxu0 0
        %266 = vmatpush1.bf16.msra.mxu0 0
        %267 = vmatprep.subr.bf16.mxu0 0
        %268 = vmatpush1.bf16.msra.mxu0 0
        %269 = vmatprep.subr.bf16.mxu0 0
        %270 = vmatpush1.bf16.msra.mxu0 0
        %271 = vmatprep.subr.bf16.mxu0 0
        %272 = vmatpush1.bf16.msra.mxu0 0
        %273 = vmatprep.subr.bf16.mxu0 0
        %274 = vmatpush1.bf16.msra.mxu0 0
        %275 = vmatprep.subr.bf16.mxu0 %v254
        %276 = vmatpush1.bf16.msra.mxu0 %v253
        %277 = vmatprep.subr.bf16.mxu0 %v252
        %278 = vmatpush1.bf16.msra.mxu0 %v251
        %279 = vmatprep.subr.bf16.mxu0 0
        %280 = vmatpush2.bf16.msra.mxu0 0
        %281 = vmatprep.subr.bf16.mxu0 0
        %282 = vmatpush2.bf16.msra.mxu0 0
        %283 = vmatprep.subr.bf16.mxu0 0
        %284 = vmatpush2.bf16.msra.mxu0 0
        %285 = vmatprep.subr.bf16.mxu0 0
        %286 = vmatpush2.bf16.msra.mxu0 0
        %287 = vmatprep.subr.bf16.mxu0 0
        %288 = vmatpush2.bf16.msra.mxu0 0
        %289 = vmatprep.subr.bf16.mxu0 0
        %290 = vmatpush2.bf16.msra.mxu0 0
        %291 = vmatprep.subr.bf16.mxu0 0
        %292 = vmatpush2.bf16.msra.mxu0 0
        %293 = vmatprep.subr.bf16.mxu0 0
        %294 = vmatpush2.bf16.msra.mxu0 0
        %295 = vmatprep.mubr.bf16.mxu0 0
        %296 = vmatmul.mubr.bf16.gmra.mxu0 %v261
        %v297 = vpop.f32.mrf.mxu0
        %v298 = vadd.f32 %v232, %v297
        %v299 = vpop.f32.mrf.mxu0
        %v300 = vadd.f32 %v236, %v299
        %v301 = vpop.f32.mrf.mxu0
        %v302 = vpop.f32.mrf.mxu0
        %303 = vdwg.mxu0
        %v304 = vxor.u32 %v298, 2147483648
        %v305 = vmul.f32 %v304, 1.442695
        %v306 = vpow.pop %v305
        %v307 = vadd.f32 %v306, 1.0
        %v308 = vrcp.pop %v307
        %v309 = vmul.f32 1.0, %v308
        %v310 = vmul.f32 %v298, %v309
        %v311 = vmul.f32 %v310, %v300
        %v312 = vpack.c.bf16 %v311, %v311
        %v313 = vld [vmem:[%s3] sm:$0xf]
        %v314 = vld [vmem:[%s3 + $0x4] sm:$0xf]
        %v315 = vld [vmem:[%s3 + $0x8] sm:$0xf]
        %v316 = vld [vmem:[%s3 + $0xc] sm:$0xf]
        %v317 = vld [vmem:[%s3 + $0x10] sm:$0xf]
        %v318 = vld [vmem:[%s3 + $0x14] sm:$0xf]
        %v319 = vld [vmem:[%s3 + $0x18] sm:$0xf]
        %v320 = vld [vmem:[%s3 + $0x1c] sm:$0xf]
        %v321 = vld [vmem:[%s3 + $0x20] sm:$0xf]
        %v322 = vld [vmem:[%s3 + $0x24] sm:$0xf]
        %v323 = vld [vmem:[%s3 + $0x28] sm:$0xf]
        %v324 = vld [vmem:[%s3 + $0x2c] sm:$0xf]
        %v325 = vld [vmem:[%s3 + $0x30] sm:$0xf]
        %v326 = vld [vmem:[%s3 + $0x34] sm:$0xf]
        %v327 = vld [vmem:[%s3 + $0x38] sm:$0xf]
        %v328 = vld [vmem:[%s3 + $0x3c] sm:$0xf]
        %v329 = vld [vmem:[%s4] sm:$0x1]
        %v331 = vlaneseq
        %v332 = vshrl.u32 %v331, 7
        %v333 = vsub.s32 0, %v332
        %v334 = vrot.slane %v329, %v333
        %v352 = vunpack.c.l.b16 %v313
        %v353 = vunpack.c.l.b16 %v314
        %v354 = vunpack.c.l.b16 %v315
        %v355 = vunpack.c.l.b16 %v316
        %v356 = vunpack.c.l.b16 %v317
        %v357 = vunpack.c.l.b16 %v318
        %v358 = vunpack.c.l.b16 %v319
        %v359 = vunpack.c.l.b16 %v320
        %v360 = vunpack.c.l.b16 %v321
        %v361 = vunpack.c.l.b16 %v322
        %v362 = vunpack.c.l.b16 %v323
        %v363 = vunpack.c.l.b16 %v324
        %v364 = vunpack.c.l.b16 %v325
        %v365 = vunpack.c.l.b16 %v326
        %v366 = vunpack.c.l.b16 %v327
        %v367 = vunpack.c.l.b16 %v328
        %v368 = vpack.c.b16 %v353, %v352
        %v369 = vpack.c.b16 %v355, %v354
        %v370 = vpack.c.b16 %v357, %v356
        %v371 = vpack.c.b16 %v359, %v358
        %v372 = vpack.c.b16 %v361, %v360
        %v373 = vpack.c.b16 %v363, %v362
        %v374 = vpack.c.b16 %v365, %v364
        %v375 = vpack.c.b16 %v367, %v366
        %384 = vmatprep.subr.bf16.mxu0 0
        %385 = vmatpush1.bf16.msra.mxu0 %v375
        %386 = vmatprep.subr.bf16.mxu0 0
        %387 = vmatpush1.bf16.msra.mxu0 %v374
        %388 = vmatprep.subr.bf16.mxu0 0
        %389 = vmatpush1.bf16.msra.mxu0 %v373
        %390 = vmatprep.subr.bf16.mxu0 0
        %391 = vmatpush1.bf16.msra.mxu0 %v372
        %392 = vmatprep.subr.bf16.mxu0 0
        %393 = vmatpush1.bf16.msra.mxu0 %v371
        %394 = vmatprep.subr.bf16.mxu0 0
        %395 = vmatpush1.bf16.msra.mxu0 %v370
        %396 = vmatprep.subr.bf16.mxu0 0
        %397 = vmatpush1.bf16.msra.mxu0 %v369
        %398 = vmatprep.subr.bf16.mxu0 0
        %399 = vmatpush1.bf16.msra.mxu0 %v368
        %400 = vmatprep.subr.bf16.mxu0 0
        %401 = vmatpush2.bf16.msra.mxu0 0
        %402 = vmatprep.subr.bf16.mxu0 0
        %403 = vmatpush2.bf16.msra.mxu0 0
        %404 = vmatprep.subr.bf16.mxu0 0
        %405 = vmatpush2.bf16.msra.mxu0 0
        %406 = vmatprep.subr.bf16.mxu0 0
        %407 = vmatpush2.bf16.msra.mxu0 0
        %408 = vmatprep.subr.bf16.mxu0 0
        %409 = vmatpush2.bf16.msra.mxu0 0
        %410 = vmatprep.subr.bf16.mxu0 0
        %411 = vmatpush2.bf16.msra.mxu0 0
        %412 = vmatprep.subr.bf16.mxu0 0
        %413 = vmatpush2.bf16.msra.mxu0 0
        %414 = vmatprep.subr.bf16.mxu0 0
        %415 = vmatpush2.bf16.msra.mxu0 0
        %416 = vmatprep.mubr.bf16.mxu0 0
        %417 = vmatmul.mubr.bf16.gmra.mxu0 %v312
        %v418 = vpop.f32.mrf.mxu0
        %v419 = vadd.f32 %v334, %v418
        %v420 = vpop.f32.mrf.mxu0
        %v421 = vpop.f32.mrf.mxu0
        %v422 = vpop.f32.mrf.mxu0
        %423 = vdwg.mxu0
        %424 = vst.msk [vmem:[%s215] sm:$0xff] %vm259, %v419
        %s425 = sand.u32 %s137, 1
        %s426 = scalar_lea.sflag [#allocation3], %s425
        %s427 = sand.u32 %s137, 1
        %s428 = smul.addr %s427, 8
        %s429 = scalar_lea.vmem [#allocation2], %s428
        // Predicated region
        $region41: #{swiglu_mlp.1} parent=39 // pred_check
          %p430 = pneg %p147
        $region42: #{swiglu_mlp.1} parent=39 // pred_check_branch
          %432 = sbr.rel (%p430) target = $region44
        $region43: #{swiglu_mlp.1} parent=39 // pred_region
          %s434 = ssub.s32 128, 128
          %435 = vsyncadd %s426, %s434
          %s436 = smul.addr %s19, 128
          %s437 = scalar_lea.hbm %s5, %s436
          %s439 = sshll.u32 %s429, 4
          %s440 = int_to_ptr.vmem [resolvable:$true] %s439
          %442 = dma.vmem_to_hbm [thread:$0]  %s440, 128, %s437, %s426
        $region44: #{swiglu_mlp.1} parent=39 // pred_fallthru
          _
      $region40: #{swiglu_mlp.1} parent=5 // pred_fallthru
        _
      %p443 = scmp.le.s32.totalorder 2, %s14
      // Predicated region
      $region45: #{swiglu_mlp.1} parent=5 // pred_check
        %p444 = pneg %p443
      $region46: #{swiglu_mlp.1} parent=5 // pred_check_branch
        %446 = sbr.rel (%p444) target = $region48
      $region47: #{swiglu_mlp.1} parent=5 // pred_region
        %s447 = ssub.s32 %s14, 2
        // Predicated region
        $region49: #{swiglu_mlp.1} parent=47 // pred_check
          %p448 = pneg %p153
        $region50: #{swiglu_mlp.1} parent=47 // pred_check_branch
          %450 = sbr.rel (%p448) target = $region52
        $region51: #{swiglu_mlp.1} parent=47 // pred_region
          %s451 = sand.u32 %s138, 1
          %s452 = scalar_lea.sflag [#allocation3], %s451
          %s453 = sand.u32 %s138, 1
          %s454 = smul.addr %s453, 8
          %s455 = scalar_lea.vmem [#allocation2], %s454
          %456 = dma.done %s452, 128
        $region52: #{swiglu_mlp.1} parent=47 // pred_fallthru
          _
      $region48: #{swiglu_mlp.1} parent=5 // pred_fallthru
        _
    $region6: #{swiglu_mlp.1} parent=1 // loop_footer
      %s18 = sadd.s32 1, %s14
    $region7: #{swiglu_mlp.1} parent=1 // loop_footer_branch
      %13 = sbr.rel target = $region3
    $region8: #{swiglu_mlp.1} parent=1 // loop_exit
      _
    %457 = vsyncpa [#allocation3], 1
    %s458 = scalar_lea.sflag [#allocation3], 1
    %459 = vsyncpa %s458, 1

</llo_original>
